<compile_context>
chip_gen: v7x
topology: tpu7x:2x2x1
jax: 0.10.0
libtpu: 0.0.40
codegen_flags: <defaults>
</compile_context>

<pallas_src>
import jax
import jax.numpy as jnp
from jax import lax
from jax.experimental import pallas as pl
from jax.experimental.pallas import tpu as pltpu

LANES = 128
SUBLANES = 8
CHUNK = 128  # rows per inner accumulation chunk (16 f32 vregs per operand)


def _make_mse_kernel(*, tile_rows, chunk, n_chunks, tiles_per_split, n_tiles,
                     valid_last, has_partial, has_oob):
    """Build the kernel with all configuration baked in as Python literals."""
    n_groups = chunk // SUBLANES

    def _sumsq_chunk(p_ref, g_ref, row0, n_valid=None):
        """(8,128) partial sum of squared diffs over rows [row0, row0+chunk)."""
        p = p_ref[pl.ds(row0, chunk), :].astype(jnp.float32)
        g = g_ref[pl.ds(row0, chunk), :].astype(jnp.float32)
        d = p - g
        sq = d * d
        if n_valid is not None:  # only the straddling chunk pays the mask
            rid = lax.broadcasted_iota(jnp.int32, (chunk, LANES), 0)
            sq = jnp.where(rid < n_valid, sq, 0.0)
        return jnp.sum(sq.reshape(n_groups, SUBLANES, LANES), axis=0)

    if n_chunks <= 4:
        unroll = True
    elif n_chunks % 4 == 0:
        unroll = 4
    elif n_chunks % 2 == 0:
        unroll = 2
    else:
        unroll = 1

    def _accumulate_full(p_ref, g_ref, o_ref):
        if n_chunks == 1:
            o_ref[0] += _sumsq_chunk(p_ref, g_ref, 0)
            return

        def body(c, acc):
            row0 = pl.multiple_of(c * chunk, chunk)
            return acc + _sumsq_chunk(p_ref, g_ref, row0)

        acc = lax.fori_loop(0, n_chunks, body,
                            jnp.zeros((SUBLANES, LANES), jnp.float32),
                            unroll=unroll)
        o_ref[0] += acc

    def _accumulate_last(p_ref, g_ref, o_ref):
        # Last (partial) tile: everything about it is static, so a Python loop
        # emits only the chunks that overlap real data; at most one chunk is
        # iota-masked, fully-invalid chunks are never emitted.
        acc = jnp.zeros((SUBLANES, LANES), jnp.float32)
        row0 = 0
        while row0 < valid_last:
            n_valid = min(chunk, valid_last - row0)
            if n_valid == chunk:
                acc = acc + _sumsq_chunk(p_ref, g_ref, row0)
            else:
                acc = acc + _sumsq_chunk(p_ref, g_ref, row0, n_valid=n_valid)
            row0 += chunk
        o_ref[0] += acc

    only_partial = has_partial and (n_tiles == 1) and (tiles_per_split == 1)

    def kernel(p_ref, g_ref, o_ref):
        s = pl.program_id(0)  # split (one per TensorCore on v7x)
        t = pl.program_id(1)  # tile within split (reduction axis)

        @pl.when(t == 0)
        def _():
            o_ref[0] = jnp.zeros((SUBLANES, LANES), jnp.float32)

        g_tile = s * tiles_per_split + t

        def run_tile():
            if only_partial:
                _accumulate_last(p_ref, g_ref, o_ref)
            elif has_partial:
                is_last = g_tile == (n_tiles - 1)

                @pl.when(jnp.logical_not(is_last))
                def _():
                    _accumulate_full(p_ref, g_ref, o_ref)

                @pl.when(is_last)
                def _():
                    _accumulate_last(p_ref, g_ref, o_ref)
            else:
                _accumulate_full(p_ref, g_ref, o_ref)

        if has_oob:
            # Fully out-of-range tiles of the ragged split: scalar skip only.
            @pl.when(g_tile < n_tiles)
            def _():
                run_tile()
        else:
            run_tile()

    return kernel


def _num_tensorcores():
    # TODO(synk): if a v7x profile shows only one core active, switch the split
    # axis to pltpu.CORE_PARALLEL / pl.core_map instead of "parallel".
    try:
        kind = jax.devices()[0].device_kind.lower()
        return 2 if "v7" in kind else 1
    except Exception:
        return 1


def mse_loss(pred, gt):
    assert pred.shape == gt.shape, "F.mse_loss broadcasting not supported here"
    n_elems = pred.size
    flat_p = pred.reshape(-1)
    flat_g = gt.reshape(-1)

    aligned = (n_elems // LANES) * LANES
    rows = aligned // LANES
    itemsizes = jnp.dtype(pred.dtype).itemsize + jnp.dtype(gt.dtype).itemsize

    if rows == 0:  # tiny input: no lane-dense slab to stream
        d = flat_p.astype(jnp.float32) - flat_g.astype(jnp.float32)
        return jnp.sum(d * d) / jnp.float32(n_elems)

    # 128-aligned prefix only (no jnp.pad of full arrays); tail handled below.
    p2 = flat_p[:aligned].reshape(rows, LANES)
    g2 = flat_g[:aligned].reshape(rows, LANES)

    # Tile sizing: ~4 MiB of combined input per grid step regardless of dtype;
    # 2 inputs x 2 pipeline buffers ≈ 8 MiB — safe on v5e/v6e/v7x.
    target_rows = max(CHUNK, ((4 << 20) // (LANES * itemsizes)) // CHUNK * CHUNK)
    if rows >= target_rows:
        tile_rows, chunk = target_rows, CHUNK
    elif rows >= CHUNK:
        tile_rows, chunk = pl.cdiv(rows, CHUNK) * CHUNK, CHUNK
    else:
        tile_rows = pl.cdiv(rows, SUBLANES) * SUBLANES
        chunk = tile_rows
    n_chunks = tile_rows // chunk

    n_tiles = pl.cdiv(rows, tile_rows)
    valid_last = rows - (n_tiles - 1) * tile_rows
    has_partial = valid_last < tile_rows

    # Two independent partial sums only where there are two TensorCores.
    n_splits = 2 if (_num_tensorcores() == 2 and n_tiles >= 2) else 1
    tiles_per_split = pl.cdiv(n_tiles, n_splits)
    has_oob = n_splits * tiles_per_split > n_tiles

    def in_index_map(s, t):
        g_tile = s * tiles_per_split + t
        if has_oob:
            g_tile = jnp.minimum(g_tile, n_tiles - 1)  # clamp; kernel skips it
        return (g_tile, 0)

    kernel = _make_mse_kernel(
        tile_rows=tile_rows, chunk=chunk, n_chunks=n_chunks,
        tiles_per_split=tiles_per_split, n_tiles=n_tiles,
        valid_last=valid_last, has_partial=has_partial, has_oob=has_oob)

    bytes_accessed = aligned * itemsizes + n_splits * SUBLANES * LANES * 4

    partials = pl.pallas_call(
        kernel,
        out_shape=jax.ShapeDtypeStruct((n_splits, SUBLANES, LANES), jnp.float32),
        grid_spec=pltpu.PrefetchScalarGridSpec(
            num_scalar_prefetch=0,
            grid=(n_splits, tiles_per_split),
            in_specs=[
                pl.BlockSpec((tile_rows, LANES), in_index_map),
                pl.BlockSpec((tile_rows, LANES), in_index_map),
            ],
            out_specs=pl.BlockSpec((1, SUBLANES, LANES), lambda s, t: (s, 0, 0)),
        ),
        compiler_params=pltpu.CompilerParams(
            dimension_semantics=("parallel", "arbitrary"),
            vmem_limit_bytes=32 * 1024 * 1024,
        ),
        cost_estimate=pl.CostEstimate(
            flops=3 * n_elems,
            transcendentals=0,
            bytes_accessed=bytes_accessed,
        ),
    )(p2, g2)

    total = jnp.sum(partials)

    if aligned < n_elems:  # <128-element ragged tail: tiny wrapper-side sum
        tp = flat_p[aligned:].astype(jnp.float32)
        tg = flat_g[aligned:].astype(jnp.float32)
        total = total + jnp.sum((tp - tg) * (tp - tg))

    return total / jnp.float32(n_elems)


if __name__ == "__main__":
    key = jax.random.PRNGKey(0)
    k1, k2 = jax.random.split(key)
    # shapes consistent with a typical NCHW prediction / ground-truth pair
    pred = jax.random.normal(k1, (2, 4, 16, 16), dtype=jnp.float32)
    gt = jax.random.normal(k2, (2, 4, 16, 16), dtype=jnp.float32)

    loss = mse_loss(pred, gt)
    jax.block_until_ready(loss)

    # sanity check vs plain JAX reference
    ref = jnp.mean((pred - gt) ** 2)
    assert jnp.allclose(loss, ref, rtol=1e-5, atol=1e-6), (loss, ref)
    print("KERNEL_OK")
</pallas_src>

<mosaic_0001>
module attributes {stable_mosaic.version = 11 : i64} {
  func.func @kernel(%arg0: i32, %arg1: i32, %arg2: memref<16x128xf32, #tpu.memory_space<vmem>>, %arg3: memref<16x128xf32, #tpu.memory_space<vmem>>, %arg4: memref<1x8x128xf32, #tpu.memory_space<vmem>>) attributes {dimension_semantics = [#tpu.dimension_semantics<parallel>, #tpu.dimension_semantics<arbitrary>], iteration_bounds = array<i64: 1, 1>, scalar_prefetch = 0 : i64, scratch_operands = 0 : i64, tpu.core_type = #tpu.core_type<tc>, window_params = [{transform_indices = @transform_0, window_bounds = array<i64: 16, 128>}, {transform_indices = @transform_1, window_bounds = array<i64: 16, 128>}, {transform_indices = @transform_2, window_bounds = array<i64: 1, 8, 128>}]} {
    %c0_i32 = arith.constant 0 : i32
    %0 = arith.cmpi eq, %arg1, %c0_i32 : i32
    %1 = arith.extui %0 : i1 to i32
    %c0_i32_0 = arith.constant 0 : i32
    %2 = arith.cmpi ne, %1, %c0_i32_0 : i32
    scf.if %2 {
      %cst_10 = arith.constant 0.000000e+00 : f32
      %15 = vector.broadcast %cst_10 : f32 to vector<8x128xf32>
      %c0_11 = arith.constant 0 : index
      %c0_12 = arith.constant 0 : index
      %c0_13 = arith.constant 0 : index
      %16 = vector.load %arg4[%c0_11, %c0_12, %c0_13] : memref<1x8x128xf32, #tpu.memory_space<vmem>>, vector<1x8x128xf32>
      %17 = vector.shape_cast %16 : vector<1x8x128xf32> to vector<8x128xf32>
      %18 = vector.shape_cast %15 : vector<8x128xf32> to vector<1x8x128xf32>
      tpu.vector_store %arg4[%c0_11, %c0_12, %c0_13], %18 {strides = array<i32>} : memref<1x8x128xf32, #tpu.memory_space<vmem>>, vector<1x8x128xf32>,
    } else {
    }
    %c0 = arith.constant 0 : index
    %c0_1 = arith.constant 0 : index
    %c0_2 = arith.constant 0 : index
    %3 = vector.load %arg4[%c0, %c0_1, %c0_2] : memref<1x8x128xf32, #tpu.memory_space<vmem>>, vector<1x8x128xf32>
    %4 = vector.shape_cast %3 : vector<1x8x128xf32> to vector<8x128xf32>
    %c0_3 = arith.constant 0 : index
    %c0_4 = arith.constant 0 : index
    %5 = vector.load %arg2[%c0_3, %c0_4] : memref<16x128xf32, #tpu.memory_space<vmem>>, vector<16x128xf32>
    %c0_5 = arith.constant 0 : index
    %c0_6 = arith.constant 0 : index
    %6 = vector.load %arg3[%c0_5, %c0_6] : memref<16x128xf32, #tpu.memory_space<vmem>>, vector<16x128xf32>
    %7 = arith.subf %5, %6 : vector<16x128xf32>
    %8 = arith.mulf %7, %7 : vector<16x128xf32>
    %9 = vector.shape_cast %8 : vector<16x128xf32> to vector<2x8x128xf32>
    %cst = arith.constant dense<0.000000e+00> : vector<8x128xf32>
    %10 = vector.multi_reduction <add>, %9, %cst [0] : vector<2x8x128xf32> to vector<8x128xf32>
    %11 = arith.addf %4, %10 : vector<8x128xf32>
    %c0_7 = arith.constant 0 : index
    %c0_8 = arith.constant 0 : index
    %c0_9 = arith.constant 0 : index
    %12 = vector.load %arg4[%c0_7, %c0_8, %c0_9] : memref<1x8x128xf32, #tpu.memory_space<vmem>>, vector<1x8x128xf32>
    %13 = vector.shape_cast %12 : vector<1x8x128xf32> to vector<8x128xf32>
    %14 = vector.shape_cast %11 : vector<8x128xf32> to vector<1x8x128xf32>
    tpu.vector_store %arg4[%c0_7, %c0_8, %c0_9], %14 {strides = array<i32>} : memref<1x8x128xf32, #tpu.memory_space<vmem>>, vector<1x8x128xf32>,
    return
  }
  func.func @transform_0(%arg0: i32, %arg1: i32) -> (i32, i32) {
    %c1_i32 = arith.constant 1 : i32
    %0 = arith.muli %arg0, %c1_i32 : i32
    %1 = arith.addi %0, %arg1 : i32
    %c0_i32 = arith.constant 0 : i32
    %c0_i32_0 = arith.constant 0 : i32
    return %1, %c0_i32 : i32, i32
  }
  func.func @transform_1(%arg0: i32, %arg1: i32) -> (i32, i32) {
    %c1_i32 = arith.constant 1 : i32
    %0 = arith.muli %arg0, %c1_i32 : i32
    %1 = arith.addi %0, %arg1 : i32
    %c0_i32 = arith.constant 0 : i32
    %c0_i32_0 = arith.constant 0 : i32
    return %1, %c0_i32 : i32, i32
  }
  func.func @transform_2(%arg0: i32, %arg1: i32) -> (i32, i32, i32) {
    %c0_i32 = arith.constant 0 : i32
    %c0_i32_0 = arith.constant 0 : i32
    %c0_i32_1 = arith.constant 0 : i32
    return %arg0, %c0_i32, %c0_i32_0 : i32, i32, i32
  }
}

</mosaic_0001>

<llo_original>
// kernel: tpu_custom_call.1
$region0: #{tpu_custom_call.1}
  #allocation0 [shape = 'u32[]', space=smem, size = 0x4, offset = 0x4, fixed_abs, tag = 'smem constant byte address 0x4 - core index']
  #allocation1 [shape = 'u32[144,128]{1,0:T(1,128)}', space=vmem, size = 0x12000, scoped, tag = 'internal scratch']
  %s0 = inlined_call_operand.hbm [shape: f32[16,128], index: 0, kind: input, shape index: {}]
  %s1 = inlined_call_operand.hbm [shape: f32[16,128], index: 1, kind: input, shape index: {}]
  %s2 = inlined_call_operand.hbm [shape: f32[1,8,128], index: 2, kind: output, shape index: {}]
  %s3 = sld [smem:[#allocation0]]
  $region30: #{tpu_custom_call.1} parent=0
    _
  %s5 = ssub.s32 1, %s3
  %s6 = scalar_select 0, %s5, %s3
  $region1: #{tpu_custom_call.1} parent=0
    #allocation2 [shape = 'u8[8192]{0}', space=vmem, size = 0x2000, scoped, tag = 'input window, operand 0, single buffered']
    #allocation3 [shape = 's32[1]{0}', space=sflag, size = 0x4, scoped, tag = 'scoped memory for tpu_custom_call.1']
    #allocation4 [shape = 's32[1]{0}', space=sflag, size = 0x4, scoped, tag = 'scoped memory for tpu_custom_call.1']
    #allocation5 [shape = 'u8[8192]{0}', space=vmem, size = 0x2000, scoped, tag = 'input window, operand 1, single buffered']
    #allocation6 [shape = 's32[1]{0}', space=sflag, size = 0x4, scoped, tag = 'scoped memory for tpu_custom_call.1']
    #allocation7 [shape = 'u8[4096]{0}', space=vmem, size = 0x1000, scoped, tag = 'output window, operand 0, single buffered']
    %7 = vsyncpa [#allocation3], 0
    %8 = vsyncpa [#allocation6], 0
    %9 = vsyncpa [#allocation4], 0
    // Predicated region
    $region2: #{tpu_custom_call.1} parent=1 // pred_check
      _
    $region3: #{tpu_custom_call.1} parent=1 // pred_check_branch
      %11 = sbr.rel (0) target = $region5
    $region4: #{tpu_custom_call.1} parent=1 // pred_region
      %s12 = sadd.s32 0, 0
      %s13 = smul.u32 2, %s12
      %s15 = ssub.s32 256, 256
      %16 = vsyncadd [#allocation3], %s15
      %s17 = smul.addr %s13, 128
      %s18 = scalar_lea.hbm %s0, %s17
      %s19 = sshll.u32 [#allocation2], 4
      %s20 = int_to_ptr.vmem [resolvable:$true] %s19
      %25 = dma.hbm_to_vmem [thread:$0]  %s18, 256, %s20, [#allocation3], 128, 128, 8
    $region5: #{tpu_custom_call.1} parent=1 // pred_fallthru
      _
    // Predicated region
    $region6: #{tpu_custom_call.1} parent=1 // pred_check
      _
    $region7: #{tpu_custom_call.1} parent=1 // pred_check_branch
      %27 = sbr.rel (0) target = $region9
    $region8: #{tpu_custom_call.1} parent=1 // pred_region
      %s28 = sadd.s32 0, 0
      %s29 = smul.u32 2, %s28
      %s31 = ssub.s32 256, 256
      %32 = vsyncadd [#allocation6], %s31
      %s33 = smul.addr %s29, 128
      %s34 = scalar_lea.hbm %s1, %s33
      %s35 = sshll.u32 [#allocation5], 4
      %s36 = int_to_ptr.vmem [resolvable:$true] %s35
      %41 = dma.hbm_to_vmem [thread:$0]  %s34, 256, %s36, [#allocation6], 128, 128, 8
    $region9: #{tpu_custom_call.1} parent=1 // pred_fallthru
      _
    // Predicated region
    $region10: #{tpu_custom_call.1} parent=1 // pred_check
      _
    $region11: #{tpu_custom_call.1} parent=1 // pred_check_branch
      %43 = sbr.rel (0) target = $region13
    $region12: #{tpu_custom_call.1} parent=1 // pred_region
      %44 = dma.done [#allocation3], 256
    $region13: #{tpu_custom_call.1} parent=1 // pred_fallthru
      _
    // Predicated region
    $region14: #{tpu_custom_call.1} parent=1 // pred_check
      _
    $region15: #{tpu_custom_call.1} parent=1 // pred_check_branch
      %46 = sbr.rel (0) target = $region17
    $region16: #{tpu_custom_call.1} parent=1 // pred_region
      %47 = dma.done [#allocation6], 256
    $region17: #{tpu_custom_call.1} parent=1 // pred_fallthru
      _
    %s48 = sadd.s32 0, 0
    %s49 = smul.u32 2, %s48
    %s50 = sadd.s32 0, 0
    %s51 = smul.u32 2, %s50
    %p52 = scmp.eq.s32.totalorder 0, 0
    // Predicated region
    $region18: #{tpu_custom_call.1} parent=1 // pred_check
      %p53 = pneg %p52
    $region19: #{tpu_custom_call.1} parent=1 // pred_check_branch
      %55 = sbr.rel (%p53) target = $region21
    $region20: #{tpu_custom_call.1} parent=1 // pred_region
      %56 = vst [vmem:[#allocation7] sm:$0xff] 0.0
    $region21: #{tpu_custom_call.1} parent=1 // pred_fallthru
      _
    %v57 = vld [vmem:[#allocation7] sm:$0xff]
    %v58 = vld [vmem:[#allocation2] sm:$0xff]
    %v59 = vld [vmem:[#allocation2 + $0x8] sm:$0xff]
    %v60 = vld [vmem:[#allocation5] sm:$0xff]
    %v61 = vld [vmem:[#allocation5 + $0x8] sm:$0xff]
    %v62 = vsub.f32 %v58, %v60
    %v63 = vsub.f32 %v59, %v61
    %v64 = vmul.f32 %v62, %v62
    %v65 = vmul.f32 %v63, %v63
    %v66 = vadd.f32 %v64, %v65
    %v67 = vadd.f32 %v57, %v66
    %68 = vst [vmem:[#allocation7] sm:$0xff] %v67
    // Predicated region
    $region22: #{tpu_custom_call.1} parent=1 // pred_check
      _
    $region23: #{tpu_custom_call.1} parent=1 // pred_check_branch
      %70 = sbr.rel (0) target = $region25
    $region24: #{tpu_custom_call.1} parent=1 // pred_region
      %s72 = ssub.s32 128, 128
      %73 = vsyncadd [#allocation4], %s72
      %s75 = sshll.u32 [#allocation7], 4
      %s76 = int_to_ptr.vmem [resolvable:$true] %s75
      %78 = dma.vmem_to_hbm [thread:$0]  %s76, 128, %s2, [#allocation4]
    $region25: #{tpu_custom_call.1} parent=1 // pred_fallthru
      _
    // Predicated region
    $region26: #{tpu_custom_call.1} parent=1 // pred_check
      _
    $region27: #{tpu_custom_call.1} parent=1 // pred_check_branch
      %80 = sbr.rel (0) target = $region29
    $region28: #{tpu_custom_call.1} parent=1 // pred_region
      %81 = dma.done [#allocation4], 128
    $region29: #{tpu_custom_call.1} parent=1 // pred_fallthru
      _
    %82 = vsyncpa [#allocation3], 1
    %83 = vsyncpa [#allocation6], 1
    %84 = vsyncpa [#allocation4], 1

</llo_original>
